<compile_context>
chip_gen: v6e
topology: v6e:2x2x1
jax: 0.10.0
libtpu: 0.0.40
codegen_flags: <defaults>
</compile_context>

<pallas_src>
import functools

import jax
import jax.numpy as jnp
from jax.experimental import pallas as pl
from jax.experimental.pallas import tpu as pltpu


def _round_up(x, m):
    return ((x + m - 1) // m) * m


def _smooth_calib_kernel(x_ref, w_ref, b_ref, y_ref, absmax_ref, acc_ref):
    """Grid = (i: row tiles, j: out-feature tiles, k: in-feature tiles).

    x_ref:      (tm, tk)   activation tile (rows x in-feature slice)
    w_ref:      (tn, tk)   weight tile in torch (out, in) layout -- no transpose
    b_ref:      (1, tn)    bias tile
    y_ref:      (tm, tn)   output tile (written at k == nk - 1)
    absmax_ref: (1, 1, tk) per-row-tile partial abs-max over this feature slice
    acc_ref:    (tm, tn)   f32 accumulator scratch, resident across the k axis
    """
    k = pl.program_id(2)
    nk = pl.num_programs(2)

    x = x_ref[...]

    @pl.when(k == 0)
    def _():
        acc_ref[...] = jnp.zeros_like(acc_ref)

    # X @ W.T done natively on the MXU by contracting the last dim of BOTH
    # operands (so the (M, K) torch weight is used as-is).
    acc_ref[...] += jax.lax.dot_general(
        x, w_ref[...],
        dimension_numbers=(((1,), (1,)), ((), ())),
        preferred_element_type=jnp.float32)

    @pl.when(k == nk - 1)
    def _():
        y_ref[...] = (acc_ref[...] + b_ref[...].astype(jnp.float32)).astype(y_ref.dtype)

    # Per-feature |X| partial max for this row tile.  Written unconditionally:
    # its value depends only on (i, k), so re-writing identical data for every
    # j is benign and keeps every output block fully written at every visit.
    tile_max = jnp.max(jnp.abs(x), axis=0, keepdims=True)          # (1, tk)
    absmax_ref[...] = tile_max[None].astype(absmax_ref.dtype)      # (1, 1, tk)


@functools.partial(jax.jit, static_argnames=("tm_max", "tn_max", "tk_max"))
def smooth_calib_forward(x, weight, bias, tm_max=256, tn_max=256, tk_max=512):
    """Returns (Y, cur_abs_max).

    x:      (..., K)
    weight: (M, K)   -- torch nn.Linear layout (kept as-is; no transpose)
    bias:   (M,)
    Y:      (..., M)
    cur_abs_max: (K,)
    """
    orig_shape = x.shape
    K = orig_shape[-1]
    M, Kw = weight.shape
    assert Kw == K

    x2d = x.reshape(-1, K)
    BN = x2d.shape[0]

    # ---- tile sizes: lane dims multiples of 128, sublane dims multiples of 8 ----
    BNr = _round_up(BN, 8)
    tm = min(tm_max, BNr)
    BNp = _round_up(BNr, tm)

    Mr = _round_up(M, 128)
    tn = min(tn_max, Mr)
    Mp = _round_up(Mr, tn)

    Kr = _round_up(K, 128)
    tk = min(tk_max, Kr)
    Kp = _round_up(Kr, tk)

    # ---- zero-pad (zeros are neutral for the matmul and for max(|x|) >= 0) ----
    if BNp != BN or Kp != K:
        x2d = jnp.pad(x2d, ((0, BNp - BN), (0, Kp - K)))
    w_p = weight
    if Mp != M or Kp != K:
        w_p = jnp.pad(weight, ((0, Mp - M), (0, Kp - K)))
    b_p = bias
    if Mp != M:
        b_p = jnp.pad(bias, (0, Mp - M))
    b2d = b_p.reshape(1, Mp)

    ni, nj, nk = BNp // tm, Mp // tn, Kp // tk
    itemsize = x2d.dtype.itemsize

    cost = pl.CostEstimate(
        flops=2 * BNp * Mp * Kp,
        transcendentals=0,
        bytes_accessed=(BNp * Kp * itemsize * nj        # X streamed once per j
                        + Mp * Kp * itemsize * ni       # W streamed once per i
                        + BNp * Mp * itemsize           # Y
                        + Mp * itemsize                 # bias
                        + ni * Kp * itemsize))          # partial abs-max

    y_pad, absmax_pad = pl.pallas_call(
        _smooth_calib_kernel,
        out_shape=(
            jax.ShapeDtypeStruct((BNp, Mp), x.dtype),
            jax.ShapeDtypeStruct((ni, 1, Kp), x.dtype),
        ),
        grid_spec=pltpu.PrefetchScalarGridSpec(
            num_scalar_prefetch=0,
            grid=(ni, nj, nk),
            in_specs=[
                pl.BlockSpec((tm, tk), lambda i, j, k: (i, k)),   # X row/feature tiles
                pl.BlockSpec((tn, tk), lambda i, j, k: (j, k)),   # W tiles, (M, K) layout
                pl.BlockSpec((1, tn), lambda i, j, k: (0, j)),    # bias tiles
            ],
            out_specs=[
                pl.BlockSpec((tm, tn), lambda i, j, k: (i, j)),      # Y (resident over k)
                pl.BlockSpec((1, 1, tk), lambda i, j, k: (i, 0, k)), # per-tile |x| max
            ],
            scratch_shapes=[pltpu.VMEM((tm, tn), jnp.float32)],
        ),
        compiler_params=pltpu.CompilerParams(
            # Row axis is parallel (per-tile partial maxima -> no in-place race),
            # j/k are sequential (k is the accumulator axis).
            dimension_semantics=("parallel", "arbitrary", "arbitrary"),
            vmem_limit_bytes=32 * 1024 * 1024,
        ),
        cost_estimate=cost,
    )(x2d, w_p, b2d)

    y = y_pad[:BN, :M].reshape(*orig_shape[:-1], M)
    cur_abs_max = jnp.max(absmax_pad, axis=(0, 1))[:K]
    return y, cur_abs_max


class SmoothFakeDynamicallyQuantizedLinearPallas:
    """Calibration-mode equivalent of the torch module (forward + running absmax)."""

    def __init__(self, in_features, out_features, alpha=0.5, key=None):
        self.in_features = in_features
        self.out_features = out_features
        self.alpha = alpha
        self.calibrating = True
        self.x_running_abs_max = None
        key = jax.random.PRNGKey(0) if key is None else key
        kw, kb = jax.random.split(key)
        # Deterministic init mimicking nn.Linear's uniform(-1/sqrt(K), 1/sqrt(K)).
        bound = 1.0 / (in_features ** 0.5)
        self.weight = jax.random.uniform(
            kw, (out_features, in_features), jnp.float32, -bound, bound)
        self.bias = jax.random.uniform(
            kb, (out_features,), jnp.float32, -bound, bound)
        # TODO(synk): inference path (to_inference / fold_weight / int8 dynamic
        # per-token linear) not implemented; module default forward is calibration.

    def __call__(self, x):
        y, cur_abs_max = smooth_calib_forward(x, self.weight, self.bias)
        if self.x_running_abs_max is None:
            self.x_running_abs_max = cur_abs_max
        else:
            self.x_running_abs_max = jnp.maximum(cur_abs_max, self.x_running_abs_max)
        return y


if __name__ == "__main__":
    key = jax.random.PRNGKey(0)
    kx, kmod = jax.random.split(key)

    B, N, K, M = 2, 8, 32, 16     # batch, seq, in_features, out_features
    x = jax.random.normal(kx, (B, N, K), jnp.float32)

    mod = SmoothFakeDynamicallyQuantizedLinearPallas(K, M, alpha=0.5, key=kmod)
    y = mod(x)
    y = jax.block_until_ready(y)
    absmax = jax.block_until_ready(mod.x_running_abs_max)

    # Sanity check against plain-JAX reference of the torch forward (calibration mode).
    y_ref = jnp.einsum("bnk,mk->bnm", x, mod.weight) + mod.bias
    absmax_ref = jnp.max(jnp.abs(x), axis=(0, 1))
    assert y.shape == (B, N, M)
    assert absmax.shape == (K,)
    assert jnp.allclose(y, y_ref, atol=1e-5, rtol=1e-5)
    assert jnp.allclose(absmax, absmax_ref, atol=1e-6, rtol=1e-6)

    print("KERNEL_OK")
</pallas_src>

<mosaic_0001>
module attributes {stable_mosaic.version = 11 : i64} {
  func.func @_smooth_calib_kernel(%arg0: i32, %arg1: i32, %arg2: i32, %arg3: memref<16x128xf32, #tpu.memory_space<vmem>>, %arg4: memref<128x128xf32, #tpu.memory_space<vmem>>, %arg5: memref<1x128xf32, #tpu.memory_space<vmem>>, %arg6: memref<16x128xf32, #tpu.memory_space<vmem>>, %arg7: memref<1x1x128xf32, #tpu.memory_space<vmem>>, %arg8: memref<16x128xf32, #tpu.memory_space<vmem>>) attributes {dimension_semantics = [#tpu.dimension_semantics<parallel>, #tpu.dimension_semantics<arbitrary>, #tpu.dimension_semantics<arbitrary>], iteration_bounds = array<i64: 1, 1, 1>, scalar_prefetch = 0 : i64, scratch_operands = 1 : i64, tpu.core_type = #tpu.core_type<tc>, window_params = [{transform_indices = @transform_0, window_bounds = array<i64: 16, 128>}, {transform_indices = @transform_1, window_bounds = array<i64: 128, 128>}, {transform_indices = @transform_2, window_bounds = array<i64: 1, 128>}, {transform_indices = @transform_3, window_bounds = array<i64: 16, 128>}, {transform_indices = @transform_4, window_bounds = array<i64: 1, 1, 128>}]} {
    %c0 = arith.constant 0 : index
    %c0_0 = arith.constant 0 : index
    %0 = vector.load %arg3[%c0, %c0_0] : memref<16x128xf32, #tpu.memory_space<vmem>>, vector<16x128xf32>
    %c0_i32 = arith.constant 0 : i32
    %1 = arith.cmpi eq, %arg2, %c0_i32 : i32
    %2 = arith.extui %1 : i1 to i32
    %c0_i32_1 = arith.constant 0 : i32
    %3 = arith.cmpi ne, %2, %c0_i32_1 : i32
    scf.if %3 {
      %cst_14 = arith.constant 0.000000e+00 : f32
      %17 = vector.broadcast %cst_14 : f32 to vector<16x128xf32>
      %c0_15 = arith.constant 0 : index
      %c0_16 = arith.constant 0 : index
      %18 = vector.load %arg8[%c0_15, %c0_16] : memref<16x128xf32, #tpu.memory_space<vmem>>, vector<16x128xf32>
      tpu.vector_store %arg8[%c0_15, %c0_16], %17 {strides = array<i32>} : memref<16x128xf32, #tpu.memory_space<vmem>>, vector<16x128xf32>,
    } else {
    }
    %c0_2 = arith.constant 0 : index
    %c0_3 = arith.constant 0 : index
    %4 = vector.load %arg8[%c0_2, %c0_3] : memref<16x128xf32, #tpu.memory_space<vmem>>, vector<16x128xf32>
    %c0_4 = arith.constant 0 : index
    %c0_5 = arith.constant 0 : index
    %5 = vector.load %arg4[%c0_4, %c0_5] : memref<128x128xf32, #tpu.memory_space<vmem>>, vector<128x128xf32>
    %cst = arith.constant dense<0.000000e+00> : vector<16x128xf32>
    %6 = tpu.matmul %0, %5, %cst {dimension_numbers = #tpu.dot_dimension_numbers<[1], [1], [0], [0], [0, 0, 1, 0], [], []>} : vector<16x128xf32>, vector<128x128xf32>, vector<16x128xf32> -> vector<16x128xf32>
    %7 = arith.addf %4, %6 : vector<16x128xf32>
    %c0_6 = arith.constant 0 : index
    %c0_7 = arith.constant 0 : index
    %8 = vector.load %arg8[%c0_6, %c0_7] : memref<16x128xf32, #tpu.memory_space<vmem>>, vector<16x128xf32>
    tpu.vector_store %arg8[%c0_6, %c0_7], %7 {strides = array<i32>} : memref<16x128xf32, #tpu.memory_space<vmem>>, vector<16x128xf32>,
    %c0_i32_8 = arith.constant 0 : i32
    %9 = arith.cmpi eq, %arg2, %c0_i32_8 : i32
    %10 = arith.extui %9 : i1 to i32
    %c0_i32_9 = arith.constant 0 : i32
    %11 = arith.cmpi ne, %10, %c0_i32_9 : i32
    scf.if %11 {
      %c0_14 = arith.constant 0 : index
      %c0_15 = arith.constant 0 : index
      %17 = vector.load %arg8[%c0_14, %c0_15] : memref<16x128xf32, #tpu.memory_space<vmem>>, vector<16x128xf32>
      %c0_16 = arith.constant 0 : index
      %c0_17 = arith.constant 0 : index
      %18 = vector.load %arg5[%c0_16, %c0_17] : memref<1x128xf32, #tpu.memory_space<vmem>>, vector<1x128xf32>
      %19 = vector.broadcast %18 : vector<1x128xf32> to vector<16x128xf32>
      %20 = arith.addf %17, %19 : vector<16x128xf32>
      %c0_18 = arith.constant 0 : index
      %c0_19 = arith.constant 0 : index
      %21 = vector.load %arg6[%c0_18, %c0_19] : memref<16x128xf32, #tpu.memory_space<vmem>>, vector<16x128xf32>
      tpu.vector_store %arg6[%c0_18, %c0_19], %20 {strides = array<i32>} : memref<16x128xf32, #tpu.memory_space<vmem>>, vector<16x128xf32>,
    } else {
    }
    %12 = math.absf %0 : vector<16x128xf32>
    %cst_10 = arith.constant dense<0xFF800000> : vector<128xf32>
    %13 = vector.multi_reduction <maximumf>, %12, %cst_10 [0] : vector<16x128xf32> to vector<128xf32>
    %14 = vector.shape_cast %13 : vector<128xf32> to vector<1x128xf32>
    %15 = vector.shape_cast %14 : vector<1x128xf32> to vector<1x1x128xf32>
    %c0_11 = arith.constant 0 : index
    %c0_12 = arith.constant 0 : index
    %c0_13 = arith.constant 0 : index
    %16 = vector.load %arg7[%c0_11, %c0_12, %c0_13] : memref<1x1x128xf32, #tpu.memory_space<vmem>>, vector<1x1x128xf32>
    tpu.vector_store %arg7[%c0_11, %c0_12, %c0_13], %15 {strides = array<i32>} : memref<1x1x128xf32, #tpu.memory_space<vmem>>, vector<1x1x128xf32>,
    return
  }
  func.func @transform_0(%arg0: i32, %arg1: i32, %arg2: i32) -> (i32, i32) {
    %c0_i32 = arith.constant 0 : i32
    return %arg0, %arg2 : i32, i32
  }
  func.func @transform_1(%arg0: i32, %arg1: i32, %arg2: i32) -> (i32, i32) {
    %c0_i32 = arith.constant 0 : i32
    return %arg1, %arg2 : i32, i32
  }
  func.func @transform_2(%arg0: i32, %arg1: i32, %arg2: i32) -> (i32, i32) {
    %c0_i32 = arith.constant 0 : i32
    %c0_i32_0 = arith.constant 0 : i32
    return %c0_i32, %arg1 : i32, i32
  }
  func.func @transform_3(%arg0: i32, %arg1: i32, %arg2: i32) -> (i32, i32) {
    %c0_i32 = arith.constant 0 : i32
    return %arg0, %arg1 : i32, i32
  }
  func.func @transform_4(%arg0: i32, %arg1: i32, %arg2: i32) -> (i32, i32, i32) {
    %c0_i32 = arith.constant 0 : i32
    %c0_i32_0 = arith.constant 0 : i32
    return %arg0, %c0_i32, %arg2 : i32, i32, i32
  }
}

</mosaic_0001>

<llo_original>
// kernel: smooth_calib_forward.1
$region0: #{smooth_calib_forward.1}
  #allocation0 [shape = 'u32[]', space=smem, size = 0x4, offset = 0x4, fixed_abs, tag = 'smem constant byte address 0x4 - core index']
  #allocation1 [shape = 'u32[144,128]{1,0:T(1,128)}', space=vmem, size = 0x12000, scoped, tag = 'internal scratch']
  #allocation2 [shape = 'f32[16,128]{1,0:T(8,128)}', space=vmem, size = 0x2000, scoped, tag = 'scratch operand']
  %s0 = inlined_call_operand.vmem [shape: f32[16,128], index: 0, kind: input, shape index: {}]
  %s1 = inlined_call_operand.vmem [shape: f32[128,128], index: 1, kind: input, shape index: {}]
  %s2 = inlined_call_operand.vmem [shape: f32[1,128], index: 2, kind: input, shape index: {}]
  %s3 = inlined_call_operand.vmem [shape: f32[16,128], index: 3, kind: output, shape index: {0}]
  %s4 = inlined_call_operand.vmem [shape: f32[1,1,128], index: 4, kind: output, shape index: {1}]
  %5 = xla_tuple %s3, %s4
  %s6 = sld [smem:[#allocation0]]
  $region38: #{smooth_calib_forward.1} parent=0
    _
  %s8 = ssub.s32 1, %s6
  %s9 = scalar_select 0, %s8, %s6
  // Predicated region
  $region2: #{smooth_calib_forward.1} parent=0 // pred_check
    _
  $region3: #{smooth_calib_forward.1} parent=0 // pred_check_branch
    %11 = sbr.rel (0) target = $region5
  $region4: #{smooth_calib_forward.1} parent=0 // pred_region
    _
  $region5: #{smooth_calib_forward.1} parent=0 // pred_fallthru
    _
  // Predicated region
  $region6: #{smooth_calib_forward.1} parent=0 // pred_check
    _
  $region7: #{smooth_calib_forward.1} parent=0 // pred_check_branch
    %13 = sbr.rel (0) target = $region9
  $region8: #{smooth_calib_forward.1} parent=0 // pred_region
    _
  $region9: #{smooth_calib_forward.1} parent=0 // pred_fallthru
    _
  // Predicated region
  $region10: #{smooth_calib_forward.1} parent=0 // pred_check
    _
  $region11: #{smooth_calib_forward.1} parent=0 // pred_check_branch
    %15 = sbr.rel (0) target = $region13
  $region12: #{smooth_calib_forward.1} parent=0 // pred_region
    _
  $region13: #{smooth_calib_forward.1} parent=0 // pred_fallthru
    _
  %v16 = vld [vmem:[%s0] sm:$0xff]
  %v17 = vld [vmem:[%s0 + $0x8] sm:$0xff]
  %p18 = scmp.eq.s32.totalorder 0, 0
  // Predicated region
  $region14: #{smooth_calib_forward.1} parent=0 // pred_check
    %p19 = pneg %p18
  $region15: #{smooth_calib_forward.1} parent=0 // pred_check_branch
    %21 = sbr.rel (%p19) target = $region17
  $region16: #{smooth_calib_forward.1} parent=0 // pred_region
    %22 = vst [vmem:[#allocation2] sm:$0xff] 0.0
    %23 = vst [vmem:[#allocation2 + $0x8] sm:$0xff] 0.0
  $region17: #{smooth_calib_forward.1} parent=0 // pred_fallthru
    _
  %v24 = vld [vmem:[#allocation2] sm:$0xff]
  %v25 = vld [vmem:[#allocation2 + $0x8] sm:$0xff]
  %v26 = vld [vmem:[%s1] sm:$0xff]
  %v27 = vld [vmem:[%s1 + $0x8] sm:$0xff]
  %v28 = vld [vmem:[%s1 + $0x10] sm:$0xff]
  %v29 = vld [vmem:[%s1 + $0x18] sm:$0xff]
  %v30 = vld [vmem:[%s1 + $0x20] sm:$0xff]
  %v31 = vld [vmem:[%s1 + $0x28] sm:$0xff]
  %v32 = vld [vmem:[%s1 + $0x30] sm:$0xff]
  %v33 = vld [vmem:[%s1 + $0x38] sm:$0xff]
  %v34 = vld [vmem:[%s1 + $0x40] sm:$0xff]
  %v35 = vld [vmem:[%s1 + $0x48] sm:$0xff]
  %v36 = vld [vmem:[%s1 + $0x50] sm:$0xff]
  %v37 = vld [vmem:[%s1 + $0x58] sm:$0xff]
  %v38 = vld [vmem:[%s1 + $0x60] sm:$0xff]
  %v39 = vld [vmem:[%s1 + $0x68] sm:$0xff]
  %v40 = vld [vmem:[%s1 + $0x70] sm:$0xff]
  %v41 = vld [vmem:[%s1 + $0x78] sm:$0xff]
  %42 = vmatprep.subr.mxu0 0.0
  %43 = vmatpush1.xpose.msra.mxu0 %v41
  %44 = vmatprep.subr.mxu0 0.0
  %45 = vmatpush1.xpose.msra.mxu0 %v40
  %46 = vmatprep.subr.mxu0 0.0
  %47 = vmatpush1.xpose.msra.mxu0 %v39
  %48 = vmatprep.subr.mxu0 0.0
  %49 = vmatpush1.xpose.msra.mxu0 %v38
  %50 = vmatprep.subr.mxu0 0.0
  %51 = vmatpush1.xpose.msra.mxu0 %v37
  %52 = vmatprep.subr.mxu0 0.0
  %53 = vmatpush1.xpose.msra.mxu0 %v36
  %54 = vmatprep.subr.mxu0 0.0
  %55 = vmatpush1.xpose.msra.mxu0 %v35
  %56 = vmatprep.subr.mxu0 0.0
  %57 = vmatpush1.xpose.msra.mxu0 %v34
  %58 = vmatprep.subr.mxu0 0.0
  %59 = vmatpush1.xpose.msra.mxu0 %v33
  %60 = vmatprep.subr.mxu0 0.0
  %61 = vmatpush1.xpose.msra.mxu0 %v32
  %62 = vmatprep.subr.mxu0 0.0
  %63 = vmatpush1.xpose.msra.mxu0 %v31
  %64 = vmatprep.subr.mxu0 0.0
  %65 = vmatpush1.xpose.msra.mxu0 %v30
  %66 = vmatprep.subr.mxu0 0.0
  %67 = vmatpush1.xpose.msra.mxu0 %v29
  %68 = vmatprep.subr.mxu0 0.0
  %69 = vmatpush1.xpose.msra.mxu0 %v28
  %70 = vmatprep.subr.mxu0 0.0
  %71 = vmatpush1.xpose.msra.mxu0 %v27
  %72 = vmatprep.subr.mxu0 0.0
  %73 = vmatpush1.xpose.msra.mxu0 %v26
  %74 = vmatprep.subr.mxu0 0.0
  %75 = vmatpush2.xpose.msra.mxu0 0.0
  %76 = vmatprep.subr.mxu0 0.0
  %77 = vmatpush2.xpose.msra.mxu0 0.0
  %78 = vmatprep.subr.mxu0 0.0
  %79 = vmatpush2.xpose.msra.mxu0 0.0
  %80 = vmatprep.subr.mxu0 0.0
  %81 = vmatpush2.xpose.msra.mxu0 0.0
  %82 = vmatprep.subr.mxu0 0.0
  %83 = vmatpush2.xpose.msra.mxu0 0.0
  %84 = vmatprep.subr.mxu0 0.0
  %85 = vmatpush2.xpose.msra.mxu0 0.0
  %86 = vmatprep.subr.mxu0 0.0
  %87 = vmatpush2.xpose.msra.mxu0 0.0
  %88 = vmatprep.subr.mxu0 0.0
  %89 = vmatpush2.xpose.msra.mxu0 0.0
  %90 = vmatprep.subr.mxu0 0.0
  %91 = vmatpush2.xpose.msra.mxu0 0.0
  %92 = vmatprep.subr.mxu0 0.0
  %93 = vmatpush2.xpose.msra.mxu0 0.0
  %94 = vmatprep.subr.mxu0 0.0
  %95 = vmatpush2.xpose.msra.mxu0 0.0
  %96 = vmatprep.subr.mxu0 0.0
  %97 = vmatpush2.xpose.msra.mxu0 0.0
  %98 = vmatprep.subr.mxu0 0.0
  %99 = vmatpush2.xpose.msra.mxu0 0.0
  %100 = vmatprep.subr.mxu0 0.0
  %101 = vmatpush2.xpose.msra.mxu0 0.0
  %102 = vmatprep.subr.mxu0 0.0
  %103 = vmatpush2.xpose.msra.mxu0 0.0
  %104 = vmatprep.subr.mxu0 0.0
  %105 = vmatpush2.xpose.msra.mxu0 0.0
  %106 = vmatprep.mubr.f32.mxu0 0.0
  %107 = vmatmul.mubr.f32.gmra.mxu0 %v16
  %v108 = vpop.f32.mrf.mxu0
  %v109 = vadd.f32 0.0, %v108
  %v110 = vpop.f32.mrf.mxu0
  %111 = vmatprep.mubr.f32.mxu0 0.0
  %112 = vmatmul.mubr.f32.gmra.mxu0 %v17
  %v113 = vpop.f32.mrf.mxu0
  %v114 = vadd.f32 0.0, %v113
  %v115 = vpop.f32.mrf.mxu0
  %116 = vdwg.mxu0
  %v117 = vadd.f32 %v24, %v109
  %v118 = vadd.f32 %v25, %v114
  %119 = vst [vmem:[#allocation2] sm:$0xff] %v117
  %120 = vst [vmem:[#allocation2 + $0x8] sm:$0xff] %v118
  // Predicated region
  $region18: #{smooth_calib_forward.1} parent=0 // pred_check
    %p121 = pneg %p18
  $region19: #{smooth_calib_forward.1} parent=0 // pred_check_branch
    %123 = sbr.rel (%p121) target = $region21
  $region20: #{smooth_calib_forward.1} parent=0 // pred_region
    %v124 = vld [vmem:[#allocation2] sm:$0xff]
    %v125 = vld [vmem:[#allocation2 + $0x8] sm:$0xff]
    %v126 = vld [vmem:[%s2] sm:$0x1]
    %v128 = vlaneseq
    %v129 = vshrl.u32 %v128, 7
    %v130 = vsub.s32 0, %v129
    %v131 = vrot.slane %v126, %v130
    %v133 = vadd.f32 %v124, %v131
    %v134 = vadd.f32 %v125, %v131
    %135 = vst [vmem:[%s3] sm:$0xff] %v133
    %136 = vst [vmem:[%s3 + $0x8] sm:$0xff] %v134
  $region21: #{smooth_calib_forward.1} parent=0 // pred_fallthru
    _
  %v137 = vand.u32 2147483647, %v16
  %v138 = vand.u32 2147483647, %v17
  %v139 = vmax.f32 %v137, %v138
  %v140 = vrot.slane %v139, 4
  %v141 = vmax.f32 %v139, %v140
  %v142 = vrot.slane %v141, 2
  %v143 = vmax.f32 %v141, %v142
  %v144 = vrot.slane %v143, 1
  %v145 = vmax.f32 %v143, %v144
  %146 = vst [vmem:[%s4] sm:$0x1] %v145
  // Predicated region
  $region22: #{smooth_calib_forward.1} parent=0 // pred_check
    _
  $region23: #{smooth_calib_forward.1} parent=0 // pred_check_branch
    %148 = sbr.rel (0) target = $region25
  $region24: #{smooth_calib_forward.1} parent=0 // pred_region
    _
  $region25: #{smooth_calib_forward.1} parent=0 // pred_fallthru
    _
  // Predicated region
  $region26: #{smooth_calib_forward.1} parent=0 // pred_check
    _
  $region27: #{smooth_calib_forward.1} parent=0 // pred_check_branch
    %150 = sbr.rel (0) target = $region29
  $region28: #{smooth_calib_forward.1} parent=0 // pred_region
    _
  $region29: #{smooth_calib_forward.1} parent=0 // pred_fallthru
    _
  // Predicated region
  $region30: #{smooth_calib_forward.1} parent=0 // pred_check
    _
  $region31: #{smooth_calib_forward.1} parent=0 // pred_check_branch
    %152 = sbr.rel (0) target = $region33
  $region32: #{smooth_calib_forward.1} parent=0 // pred_region
    _
  $region33: #{smooth_calib_forward.1} parent=0 // pred_fallthru
    _
  // Predicated region
  $region34: #{smooth_calib_forward.1} parent=0 // pred_check
    _
  $region35: #{smooth_calib_forward.1} parent=0 // pred_check_branch
    %154 = sbr.rel (0) target = $region37
  $region36: #{smooth_calib_forward.1} parent=0 // pred_region
    _
  $region37: #{smooth_calib_forward.1} parent=0 // pred_fallthru
    _

</llo_original>
